<compile_context>
chip_gen: v6e
topology: v6e:2x2x1
jax: 0.10.0
libtpu: 0.0.40
codegen_flags: <defaults>
</compile_context>

<pallas_src>
import functools

import numpy as np
import jax
import jax.numpy as jnp
from jax import lax
from jax.experimental import pallas as pl
from jax.experimental.pallas import tpu as pltpu


def _tgv_kernel(y_ref, out_ref, *, W, ths, n_it_max, crit, tau, rho, sigma,
                check_every):
    dtype = y_ref.dtype
    H, Wp = y_ref.shape          # Wp = (images in this block) * W, lane axis

    y = y_ref[...]

    lambda1 = ths * 0.0          # literal reproduction of the reference
    lambda2 = ths * 1.0
    tl1 = tau * lambda1
    inv_1p_tau = 1.0 / (1.0 + tau)
    one_m_rho = 1.0 - rho
    crit_sq = crit * crit

    one = jnp.asarray(1.0, dtype)
    ty = tau * y                 # loop-invariant, hoisted

    # Boundary masks, hoisted out of the loop (derived in-kernel, no wmap DMA).
    hi = lax.broadcasted_iota(jnp.int32, (H, Wp), 0)
    wi = lax.broadcasted_iota(jnp.int32, (H, Wp), 1)
    wrem = (wi & (W - 1)) if (W & (W - 1)) == 0 else (wi % W)
    h_first = hi == 0
    h_last = hi == (H - 1)
    w_first = wrem == 0
    w_last = wrem == (W - 1)

    sh_h = H - 1     # roll amount equivalent to shift "-1" along H (sublanes)
    sh_w = Wp - 1    # roll amount equivalent to shift "-1" along packed lanes

    # ---- finite-difference stencils: pltpu.roll (XLU) + hoisted-mask select -
    def nabla2(x):
        d0 = jnp.where(h_last, 0.0, pltpu.roll(x, sh_h, axis=0) - x)
        d1 = jnp.where(w_last, 0.0, pltpu.roll(x, sh_w, axis=1) - x)
        return d0, d1

    def nabla2_adjoint(d0, d1):
        e0 = jnp.where(h_last, 0.0, d0)
        e1 = jnp.where(w_last, 0.0, d1)
        # the rolls wrap zeroed boundary values back in -> no extra masking
        return (pltpu.roll(e0, 1, axis=0) - e0
                + pltpu.roll(e1, 1, axis=1) - e1)

    def epsilon2(i0, i1):
        g0 = i0 - jnp.where(h_first, 0.0, pltpu.roll(i0, 1, axis=0))
        g1 = jnp.where(w_first, 0.0, i0 - pltpu.roll(i0, 1, axis=1))
        g2 = i1 - jnp.where(w_first, 0.0, pltpu.roll(i1, 1, axis=1))
        g3 = jnp.where(h_last, 0.0, pltpu.roll(i1, sh_h, axis=0) - i1)
        return g0, g1, g2, g3

    def epsilon2_adjoint(g0, g1, g2, g3):
        i0 = (g0
              - jnp.where(h_last, 0.0, pltpu.roll(g0, sh_h, axis=0))
              - jnp.where(w_last, 0.0, pltpu.roll(g1, sh_w, axis=1))
              + jnp.where(w_first, 0.0, g1))
        i1 = (g2
              - jnp.where(w_last, 0.0, pltpu.roll(g2, sh_w, axis=1))
              - jnp.where(h_last, 0.0, g3)
              + jnp.where(h_first, 0.0, pltpu.roll(g3, 1, axis=0)))
        return i0, i1

    # ---- PDHG loop with early exit (while_loop) -----------------------------
    def cond_fn(carry):
        it, done = carry[0], carry[1]
        return jnp.logical_and(it < n_it_max, done == 0)

    def body_fn(carry):
        it, done, x2, r20, r21, u20, u21, u22, u23 = carry

        # tmp = tau * eps^T(u2)
        t0, t1 = epsilon2_adjoint(u20, u21, u22, u23)
        t0 = tau * t0
        t1 = tau * t1

        # x = prox_tau_fx(x2 - nabla^T(tmp), y) = (. + tau*y)/(1+tau)
        x = (x2 - nabla2_adjoint(t0, t1) + ty) * inv_1p_tau

        # r = prox_tau_fr(r2 + tmp, lambda1): fused rsqrt + min shrinkage
        # (tl1 = 0 -> rsqrt(0)*0 = NaN path identical to torch's 0/0).
        rr0 = r20 + t0
        rr1 = r21 + t1
        inv_mr = jnp.minimum(lax.rsqrt(rr0 * rr0 + rr1 * rr1) * tl1, one)
        shrink = one - inv_mr
        r0 = rr0 * shrink
        r1 = rr1 * shrink

        # u = prox_sigma_g_conj(u2 + sigma*eps(nabla(2x - x2) - (2r - r2)))
        d0, d1 = nabla2(2.0 * x - x2)
        w0 = d0 - (2.0 * r0 - r20)
        w1 = d1 - (2.0 * r1 - r21)

        # over-relax x2 / r2 here to shorten live ranges of x, r0, r1
        x2n = x2 + rho * (x - x2)
        r20n = r20 + rho * (r0 - r20)
        r21n = r21 + rho * (r1 - r21)

        g0, g1, g2, g3 = epsilon2(w0, w1)
        uu0 = u20 + sigma * g0
        uu1 = u21 + sigma * g1
        uu2 = u22 + sigma * g2
        uu3 = u23 + sigma * g3
        inv_mu = jnp.minimum(
            lambda2 * lax.rsqrt(uu0 * uu0 + uu1 * uu1 + uu2 * uu2 + uu3 * uu3),
            one)
        rim = rho * inv_mu
        u20n = u20 * one_m_rho + uu0 * rim
        u21n = u21 * one_m_rho + uu1 * rim
        u22n = u22 * one_m_rho + uu2 * rim
        u23n = u23 * one_m_rho + uu3 * rim

        # convergence (squared form of ||x_prev-x2|| / ||x2+1e-12|| < crit),
        # gated to every `check_every` iterations so the cross-lane reductions
        # stay off the per-iteration critical path.
        if (check_every & (check_every - 1)) == 0:
            at_check = (it & (check_every - 1)) == 0
        else:
            at_check = (it % check_every) == 0
        do_check = jnp.logical_and(it > 1, at_check)

        def _check():
            df = (x2 - x2n).astype(jnp.float32)
            err = jnp.sum(df * df)
            xs = (x2n + 1e-12).astype(jnp.float32)
            den = jnp.sum(xs * xs)
            return (err < crit_sq * den).astype(jnp.int32)

        done_n = lax.cond(do_check, _check, lambda: jnp.int32(0))

        return (it + 1, done_n,
                x2n, r20n, r21n, u20n, u21n, u22n, u23n)

    z = jnp.zeros((H, Wp), dtype)
    init = (jnp.int32(0), jnp.int32(0), y, z, z, z, z, z, z)
    final = lax.while_loop(cond_fn, body_fn, init)
    out_ref[...] = final[2]


def tgv_denoise(y, ths, *, n_it_max=1000, crit=1e-5, check_every=8):
    """JAX/Pallas equivalent of _TGVDenoiser(ndim=2).forward(y, ths)."""
    B, C, H, W = y.shape
    N = B * C
    tau = 0.01
    rho = 1.99
    sigma = 1.0 / tau / 72.0

    # Lane-dense packing: (B, C, H, W) -> (H, N*W) with W fastest within each
    # image, so the 128-lane axis carries N*W elements and H sits on sublanes.
    yp = jnp.transpose(y.reshape(N, H, W), (1, 0, 2)).reshape(H, N * W)
    itemsize = yp.dtype.itemsize

    # ---- VMEM budgeting (per-generation) + lane-axis tiling -----------------
    try:
        vmem_cap = int(pltpu.get_tpu_info().vmem_capacity_bytes)
    except Exception:
        vmem_cap = 64 << 20          # conservative: v7x per-TensorCore VMEM
    vmem_budget = int(vmem_cap * 0.85)

    def _block_vmem(n_img):
        # 7 resident state planes + pipelined in/out buffers + live temporaries
        return H * n_img * W * itemsize * 32

    images_per_block = N
    for d in range(N, 0, -1):
        if N % d:
            continue
        if _block_vmem(d) > vmem_budget:
            continue
        if d < N and (d * W) % 128 != 0:
            continue                  # tiled blocks must stay 128-lane aligned
        images_per_block = d
        break
    # TODO(synk): on v7x also split into 2 blocks below the VMEM threshold so
    # both TensorCores are used; kept single-block when it fits to preserve the
    # reference's single global convergence criterion.

    nb = N // images_per_block
    wblk = images_per_block * W

    kernel = functools.partial(
        _tgv_kernel, W=W, ths=float(ths), n_it_max=int(n_it_max),
        crit=float(crit), tau=tau, rho=rho, sigma=sigma,
        check_every=int(check_every))

    vmem_limit = int(min(vmem_budget,
                         max(_block_vmem(images_per_block), 32 << 20)))
    compiler_params = pltpu.CompilerParams(
        dimension_semantics=("parallel",),
        vmem_limit_bytes=vmem_limit)

    elems = H * N * W
    cost = pl.CostEstimate(
        flops=int(110 * elems * n_it_max),
        transcendentals=int(2 * elems * n_it_max),
        bytes_accessed=int(3 * elems * itemsize))

    out = pl.pallas_call(
        kernel,
        out_shape=jax.ShapeDtypeStruct(yp.shape, yp.dtype),
        grid=(nb,),
        in_specs=[pl.BlockSpec((H, wblk), lambda i: (0, i))],
        out_specs=pl.BlockSpec((H, wblk), lambda i: (0, i)),
        compiler_params=compiler_params,
        cost_estimate=cost,
    )(yp)

    return jnp.transpose(out.reshape(H, N, W), (1, 0, 2)).reshape(B, C, H, W)


if __name__ == "__main__":
    key = jax.random.PRNGKey(0)
    B, C, H, W = 2, 4, 16, 16
    y = jax.random.normal(key, (B, C, H, W), dtype=jnp.float32)
    ths = 0.1

    # Sanity check: from a cold start one PDHG iteration leaves x2 == y
    # (tmp = 0  =>  x = (y + tau*y)/(1+tau) = y,  x2 += rho*0).
    out1 = jax.block_until_ready(tgv_denoise(y, ths, n_it_max=1))
    assert out1.shape == y.shape and out1.dtype == y.dtype
    np.testing.assert_allclose(np.asarray(out1), np.asarray(y),
                               rtol=1e-4, atol=1e-5)

    # Full run: the whole PDHG while-loop (with gated early exit) in-kernel.
    # TODO(synk): lambda1 = ths*0.0 (taken literally from the reference) makes
    # prox_tau_fr a 0/0 path, so iterates go NaN exactly as the PyTorch code
    # would; this is reproduced, not "fixed".
    out = jax.block_until_ready(tgv_denoise(y, ths, n_it_max=200))
    assert out.shape == y.shape and out.dtype == y.dtype

    print("KERNEL_OK")
</pallas_src>

<mosaic_0001>
module attributes {stable_mosaic.version = 11 : i64} {
  func.func @_tgv_kernel(%arg0: i32, %arg1: memref<16x128xf32, #tpu.memory_space<vmem>>, %arg2: memref<16x128xf32, #tpu.memory_space<vmem>>) attributes {dimension_semantics = [#tpu.dimension_semantics<parallel>], iteration_bounds = array<i64: 1>, scalar_prefetch = 0 : i64, scratch_operands = 0 : i64, tpu.core_type = #tpu.core_type<tc>, window_params = [{transform_indices = @transform_0, window_bounds = array<i64: 16, 128>}, {transform_indices = @transform_1, window_bounds = array<i64: 16, 128>}]} {
    %c0 = arith.constant 0 : index
    %c0_0 = arith.constant 0 : index
    %0 = vector.load %arg1[%c0, %c0_0] : memref<16x128xf32, #tpu.memory_space<vmem>>, vector<16x128xf32>
    %cst = arith.constant 0.00999999977 : f32
    %1 = vector.broadcast %cst : f32 to vector<16x128xf32>
    %2 = arith.mulf %1, %0 : vector<16x128xf32>
    %3 = tpu.iota {dimensions = array<i32: 0>} : vector<16x128xi32>
    %4 = tpu.iota {dimensions = array<i32: 1>} : vector<16x128xi32>
    %c15_i32 = arith.constant 15 : i32
    %5 = vector.broadcast %c15_i32 : i32 to vector<16x128xi32>
    %6 = arith.andi %4, %5 : vector<16x128xi32>
    %c0_i32 = arith.constant 0 : i32
    %7 = vector.broadcast %c0_i32 : i32 to vector<16x128xi32>
    %8 = arith.cmpi eq, %3, %7 : vector<16x128xi32>
    %c15_i32_1 = arith.constant 15 : i32
    %9 = vector.broadcast %c15_i32_1 : i32 to vector<16x128xi32>
    %10 = arith.cmpi eq, %3, %9 : vector<16x128xi32>
    %c0_i32_2 = arith.constant 0 : i32
    %11 = vector.broadcast %c0_i32_2 : i32 to vector<16x128xi32>
    %12 = arith.cmpi eq, %6, %11 : vector<16x128xi32>
    %c15_i32_3 = arith.constant 15 : i32
    %13 = vector.broadcast %c15_i32_3 : i32 to vector<16x128xi32>
    %14 = arith.cmpi eq, %6, %13 : vector<16x128xi32>
    %cst_4 = arith.constant 0.000000e+00 : f32
    %15 = vector.broadcast %cst_4 : f32 to vector<16x128xf32>
    %cst_5 = arith.constant 1.000000e+00 : f32
    %c0_i32_6 = arith.constant 0 : i32
    %c0_i32_7 = arith.constant 0 : i32
    %16:9 = scf.while (%arg3 = %c0_i32_6, %arg4 = %c0_i32_7, %arg5 = %0, %arg6 = %15, %arg7 = %15, %arg8 = %15, %arg9 = %15, %arg10 = %15, %arg11 = %15) : (i32, i32, vector<16x128xf32>, vector<16x128xf32>, vector<16x128xf32>, vector<16x128xf32>, vector<16x128xf32>, vector<16x128xf32>, vector<16x128xf32>) -> (i32, i32, vector<16x128xf32>, vector<16x128xf32>, vector<16x128xf32>, vector<16x128xf32>, vector<16x128xf32>, vector<16x128xf32>, vector<16x128xf32>) {
      %c1_i32 = arith.constant 1 : i32
      %18 = arith.cmpi slt, %arg3, %c1_i32 : i32
      %c0_i32_10 = arith.constant 0 : i32
      %19 = arith.cmpi eq, %arg4, %c0_i32_10 : i32
      %20 = arith.andi %18, %19 : i1
      scf.condition(%20) %arg3, %arg4, %arg5, %arg6, %arg7, %arg8, %arg9, %arg10, %arg11 : i32, i32, vector<16x128xf32>, vector<16x128xf32>, vector<16x128xf32>, vector<16x128xf32>, vector<16x128xf32>, vector<16x128xf32>, vector<16x128xf32>
    } do {
    ^bb0(%arg3: i32, %arg4: i32, %arg5: vector<16x128xf32>, %arg6: vector<16x128xf32>, %arg7: vector<16x128xf32>, %arg8: vector<16x128xf32>, %arg9: vector<16x128xf32>, %arg10: vector<16x128xf32>, %arg11: vector<16x128xf32>):
      %c15_i32_10 = arith.constant 15 : i32
      %18 = tpu.dynamic_rotate %arg8 by %c15_i32_10 dim 0 : vector<16x128xf32>, i32 -> vector<16x128xf32>
      %cst_11 = arith.constant 0.000000e+00 : f32
      %19 = vector.broadcast %cst_11 : f32 to vector<16x128xf32>
      %20 = arith.select %10, %19, %18 : vector<16x128xi1>, vector<16x128xf32>
      %21 = arith.subf %arg8, %20 : vector<16x128xf32>
      %c127_i32 = arith.constant 127 : i32
      %22 = tpu.dynamic_rotate %arg9 by %c127_i32 dim 1 : vector<16x128xf32>, i32 -> vector<16x128xf32>
      %cst_12 = arith.constant 0.000000e+00 : f32
      %23 = vector.broadcast %cst_12 : f32 to vector<16x128xf32>
      %24 = arith.select %14, %23, %22 : vector<16x128xi1>, vector<16x128xf32>
      %25 = arith.subf %21, %24 : vector<16x128xf32>
      %cst_13 = arith.constant 0.000000e+00 : f32
      %26 = vector.broadcast %cst_13 : f32 to vector<16x128xf32>
      %27 = arith.select %12, %26, %arg9 : vector<16x128xi1>, vector<16x128xf32>
      %28 = arith.addf %25, %27 : vector<16x128xf32>
      %c127_i32_14 = arith.constant 127 : i32
      %29 = tpu.dynamic_rotate %arg10 by %c127_i32_14 dim 1 : vector<16x128xf32>, i32 -> vector<16x128xf32>
      %cst_15 = arith.constant 0.000000e+00 : f32
      %30 = vector.broadcast %cst_15 : f32 to vector<16x128xf32>
      %31 = arith.select %14, %30, %29 : vector<16x128xi1>, vector<16x128xf32>
      %32 = arith.subf %arg10, %31 : vector<16x128xf32>
      %cst_16 = arith.constant 0.000000e+00 : f32
      %33 = vector.broadcast %cst_16 : f32 to vector<16x128xf32>
      %34 = arith.select %10, %33, %arg11 : vector<16x128xi1>, vector<16x128xf32>
      %35 = arith.subf %32, %34 : vector<16x128xf32>
      %c1_i32 = arith.constant 1 : i32
      %36 = tpu.dynamic_rotate %arg11 by %c1_i32 dim 0 : vector<16x128xf32>, i32 -> vector<16x128xf32>
      %cst_17 = arith.constant 0.000000e+00 : f32
      %37 = vector.broadcast %cst_17 : f32 to vector<16x128xf32>
      %38 = arith.select %8, %37, %36 : vector<16x128xi1>, vector<16x128xf32>
      %39 = arith.addf %35, %38 : vector<16x128xf32>
      %cst_18 = arith.constant 0.00999999977 : f32
      %40 = vector.broadcast %cst_18 : f32 to vector<16x128xf32>
      %41 = arith.mulf %40, %28 : vector<16x128xf32>
      %cst_19 = arith.constant 0.00999999977 : f32
      %42 = vector.broadcast %cst_19 : f32 to vector<16x128xf32>
      %43 = arith.mulf %42, %39 : vector<16x128xf32>
      %cst_20 = arith.constant 0.000000e+00 : f32
      %44 = vector.broadcast %cst_20 : f32 to vector<16x128xf32>
      %45 = arith.select %10, %44, %41 : vector<16x128xi1>, vector<16x128xf32>
      %cst_21 = arith.constant 0.000000e+00 : f32
      %46 = vector.broadcast %cst_21 : f32 to vector<16x128xf32>
      %47 = arith.select %14, %46, %43 : vector<16x128xi1>, vector<16x128xf32>
      %c1_i32_22 = arith.constant 1 : i32
      %48 = tpu.dynamic_rotate %45 by %c1_i32_22 dim 0 : vector<16x128xf32>, i32 -> vector<16x128xf32>
      %49 = arith.subf %48, %45 : vector<16x128xf32>
      %c1_i32_23 = arith.constant 1 : i32
      %50 = tpu.dynamic_rotate %47 by %c1_i32_23 dim 1 : vector<16x128xf32>, i32 -> vector<16x128xf32>
      %51 = arith.addf %49, %50 : vector<16x128xf32>
      %52 = arith.subf %51, %47 : vector<16x128xf32>
      %53 = arith.subf %arg5, %52 : vector<16x128xf32>
      %54 = arith.addf %53, %2 : vector<16x128xf32>
      %cst_24 = arith.constant 9.900990e-01 : f32
      %55 = vector.broadcast %cst_24 : f32 to vector<16x128xf32>
      %56 = arith.mulf %54, %55 : vector<16x128xf32>
      %57 = arith.addf %arg6, %41 : vector<16x128xf32>
      %58 = arith.addf %arg7, %43 : vector<16x128xf32>
      %59 = arith.mulf %57, %57 : vector<16x128xf32>
      %60 = arith.mulf %58, %58 : vector<16x128xf32>
      %61 = arith.addf %59, %60 : vector<16x128xf32>
      %62 = math.rsqrt %61 : vector<16x128xf32>
      %cst_25 = arith.constant 0.000000e+00 : f32
      %63 = vector.broadcast %cst_25 : f32 to vector<16x128xf32>
      %64 = arith.mulf %62, %63 : vector<16x128xf32>
      %65 = vector.broadcast %cst_5 : f32 to vector<16x128xf32>
      %66 = arith.minimumf %64, %65 : vector<16x128xf32>
      %67 = vector.broadcast %cst_5 : f32 to vector<16x128xf32>
      %68 = arith.subf %67, %66 : vector<16x128xf32>
      %69 = arith.mulf %57, %68 : vector<16x128xf32>
      %70 = arith.mulf %58, %68 : vector<16x128xf32>
      %cst_26 = arith.constant 2.000000e+00 : f32
      %71 = vector.broadcast %cst_26 : f32 to vector<16x128xf32>
      %72 = arith.mulf %71, %56 : vector<16x128xf32>
      %73 = arith.subf %72, %arg5 : vector<16x128xf32>
      %c15_i32_27 = arith.constant 15 : i32
      %74 = tpu.dynamic_rotate %73 by %c15_i32_27 dim 0 : vector<16x128xf32>, i32 -> vector<16x128xf32>
      %75 = arith.subf %74, %73 : vector<16x128xf32>
      %cst_28 = arith.constant 0.000000e+00 : f32
      %76 = vector.broadcast %cst_28 : f32 to vector<16x128xf32>
      %77 = arith.select %10, %76, %75 : vector<16x128xi1>, vector<16x128xf32>
      %c127_i32_29 = arith.constant 127 : i32
      %78 = tpu.dynamic_rotate %73 by %c127_i32_29 dim 1 : vector<16x128xf32>, i32 -> vector<16x128xf32>
      %79 = arith.subf %78, %73 : vector<16x128xf32>
      %cst_30 = arith.constant 0.000000e+00 : f32
      %80 = vector.broadcast %cst_30 : f32 to vector<16x128xf32>
      %81 = arith.select %14, %80, %79 : vector<16x128xi1>, vector<16x128xf32>
      %cst_31 = arith.constant 2.000000e+00 : f32
      %82 = vector.broadcast %cst_31 : f32 to vector<16x128xf32>
      %83 = arith.mulf %82, %69 : vector<16x128xf32>
      %84 = arith.subf %83, %arg6 : vector<16x128xf32>
      %85 = arith.subf %77, %84 : vector<16x128xf32>
      %cst_32 = arith.constant 2.000000e+00 : f32
      %86 = vector.broadcast %cst_32 : f32 to vector<16x128xf32>
      %87 = arith.mulf %86, %70 : vector<16x128xf32>
      %88 = arith.subf %87, %arg7 : vector<16x128xf32>
      %89 = arith.subf %81, %88 : vector<16x128xf32>
      %90 = arith.subf %56, %arg5 : vector<16x128xf32>
      %cst_33 = arith.constant 1.990000e+00 : f32
      %91 = vector.broadcast %cst_33 : f32 to vector<16x128xf32>
      %92 = arith.mulf %91, %90 : vector<16x128xf32>
      %93 = arith.addf %arg5, %92 : vector<16x128xf32>
      %94 = arith.subf %69, %arg6 : vector<16x128xf32>
      %cst_34 = arith.constant 1.990000e+00 : f32
      %95 = vector.broadcast %cst_34 : f32 to vector<16x128xf32>
      %96 = arith.mulf %95, %94 : vector<16x128xf32>
      %97 = arith.addf %arg6, %96 : vector<16x128xf32>
      %98 = arith.subf %70, %arg7 : vector<16x128xf32>
      %cst_35 = arith.constant 1.990000e+00 : f32
      %99 = vector.broadcast %cst_35 : f32 to vector<16x128xf32>
      %100 = arith.mulf %99, %98 : vector<16x128xf32>
      %101 = arith.addf %arg7, %100 : vector<16x128xf32>
      %c1_i32_36 = arith.constant 1 : i32
      %102 = tpu.dynamic_rotate %85 by %c1_i32_36 dim 0 : vector<16x128xf32>, i32 -> vector<16x128xf32>
      %cst_37 = arith.constant 0.000000e+00 : f32
      %103 = vector.broadcast %cst_37 : f32 to vector<16x128xf32>
      %104 = arith.select %8, %103, %102 : vector<16x128xi1>, vector<16x128xf32>
      %105 = arith.subf %85, %104 : vector<16x128xf32>
      %c1_i32_38 = arith.constant 1 : i32
      %106 = tpu.dynamic_rotate %85 by %c1_i32_38 dim 1 : vector<16x128xf32>, i32 -> vector<16x128xf32>
      %107 = arith.subf %85, %106 : vector<16x128xf32>
      %cst_39 = arith.constant 0.000000e+00 : f32
      %108 = vector.broadcast %cst_39 : f32 to vector<16x128xf32>
      %109 = arith.select %12, %108, %107 : vector<16x128xi1>, vector<16x128xf32>
      %c1_i32_40 = arith.constant 1 : i32
      %110 = tpu.dynamic_rotate %89 by %c1_i32_40 dim 1 : vector<16x128xf32>, i32 -> vector<16x128xf32>
      %cst_41 = arith.constant 0.000000e+00 : f32
      %111 = vector.broadcast %cst_41 : f32 to vector<16x128xf32>
      %112 = arith.select %12, %111, %110 : vector<16x128xi1>, vector<16x128xf32>
      %113 = arith.subf %89, %112 : vector<16x128xf32>
      %c15_i32_42 = arith.constant 15 : i32
      %114 = tpu.dynamic_rotate %89 by %c15_i32_42 dim 0 : vector<16x128xf32>, i32 -> vector<16x128xf32>
      %115 = arith.subf %114, %89 : vector<16x128xf32>
      %cst_43 = arith.constant 0.000000e+00 : f32
      %116 = vector.broadcast %cst_43 : f32 to vector<16x128xf32>
      %117 = arith.select %10, %116, %115 : vector<16x128xi1>, vector<16x128xf32>
      %cst_44 = arith.constant 1.38888884 : f32
      %118 = vector.broadcast %cst_44 : f32 to vector<16x128xf32>
      %119 = arith.mulf %118, %105 : vector<16x128xf32>
      %120 = arith.addf %arg8, %119 : vector<16x128xf32>
      %cst_45 = arith.constant 1.38888884 : f32
      %121 = vector.broadcast %cst_45 : f32 to vector<16x128xf32>
      %122 = arith.mulf %121, %109 : vector<16x128xf32>
      %123 = arith.addf %arg9, %122 : vector<16x128xf32>
      %cst_46 = arith.constant 1.38888884 : f32
      %124 = vector.broadcast %cst_46 : f32 to vector<16x128xf32>
      %125 = arith.mulf %124, %113 : vector<16x128xf32>
      %126 = arith.addf %arg10, %125 : vector<16x128xf32>
      %cst_47 = arith.constant 1.38888884 : f32
      %127 = vector.broadcast %cst_47 : f32 to vector<16x128xf32>
      %128 = arith.mulf %127, %117 : vector<16x128xf32>
      %129 = arith.addf %arg11, %128 : vector<16x128xf32>
      %130 = arith.mulf %120, %120 : vector<16x128xf32>
      %131 = arith.mulf %123, %123 : vector<16x128xf32>
      %132 = arith.addf %130, %131 : vector<16x128xf32>
      %133 = arith.mulf %126, %126 : vector<16x128xf32>
      %134 = arith.addf %132, %133 : vector<16x128xf32>
      %135 = arith.mulf %129, %129 : vector<16x128xf32>
      %136 = arith.addf %134, %135 : vector<16x128xf32>
      %137 = math.rsqrt %136 : vector<16x128xf32>
      %cst_48 = arith.constant 1.000000e-01 : f32
      %138 = vector.broadcast %cst_48 : f32 to vector<16x128xf32>
      %139 = arith.mulf %138, %137 : vector<16x128xf32>
      %140 = vector.broadcast %cst_5 : f32 to vector<16x128xf32>
      %141 = arith.minimumf %139, %140 : vector<16x128xf32>
      %cst_49 = arith.constant 1.990000e+00 : f32
      %142 = vector.broadcast %cst_49 : f32 to vector<16x128xf32>
      %143 = arith.mulf %142, %141 : vector<16x128xf32>
      %cst_50 = arith.constant -9.900000e-01 : f32
      %144 = vector.broadcast %cst_50 : f32 to vector<16x128xf32>
      %145 = arith.mulf %arg8, %144 : vector<16x128xf32>
      %146 = arith.mulf %120, %143 : vector<16x128xf32>
      %147 = arith.addf %145, %146 : vector<16x128xf32>
      %cst_51 = arith.constant -9.900000e-01 : f32
      %148 = vector.broadcast %cst_51 : f32 to vector<16x128xf32>
      %149 = arith.mulf %arg9, %148 : vector<16x128xf32>
      %150 = arith.mulf %123, %143 : vector<16x128xf32>
      %151 = arith.addf %149, %150 : vector<16x128xf32>
      %cst_52 = arith.constant -9.900000e-01 : f32
      %152 = vector.broadcast %cst_52 : f32 to vector<16x128xf32>
      %153 = arith.mulf %arg10, %152 : vector<16x128xf32>
      %154 = arith.mulf %126, %143 : vector<16x128xf32>
      %155 = arith.addf %153, %154 : vector<16x128xf32>
      %cst_53 = arith.constant -9.900000e-01 : f32
      %156 = vector.broadcast %cst_53 : f32 to vector<16x128xf32>
      %157 = arith.mulf %arg11, %156 : vector<16x128xf32>
      %158 = arith.mulf %129, %143 : vector<16x128xf32>
      %159 = arith.addf %157, %158 : vector<16x128xf32>
      %c7_i32 = arith.constant 7 : i32
      %160 = arith.andi %arg3, %c7_i32 : i32
      %c0_i32_54 = arith.constant 0 : i32
      %161 = arith.cmpi eq, %160, %c0_i32_54 : i32
      %c1_i32_55 = arith.constant 1 : i32
      %162 = arith.cmpi sgt, %arg3, %c1_i32_55 : i32
      %163 = arith.andi %162, %161 : i1
      %164 = arith.extui %163 : i1 to i32
      %c0_i32_56 = arith.constant 0 : i32
      %165 = arith.cmpi ne, %164, %c0_i32_56 : i32
      %166 = scf.if %165 -> (i32) {
        %168 = arith.subf %arg5, %93 : vector<16x128xf32>
        %169 = arith.mulf %168, %168 : vector<16x128xf32>
        %170 = vector.shape_cast %169 : vector<16x128xf32> to vector<1x16x128xf32>
        %cst_58 = arith.constant dense<0.000000e+00> : vector<1xf32>
        %171 = vector.multi_reduction <add>, %170, %cst_58 [1, 2] : vector<1x16x128xf32> to vector<1xf32>
        %172 = vector.shape_cast %171 : vector<1xf32> to vector<1x1x1xf32>
        %173 = vector.extract %172[0, 0, 0] : f32 from vector<1x1x1xf32>
        %cst_59 = arith.constant 9.99999996E-13 : f32
        %174 = vector.broadcast %cst_59 : f32 to vector<16x128xf32>
        %175 = arith.addf %93, %174 : vector<16x128xf32>
        %176 = arith.mulf %175, %175 : vector<16x128xf32>
        %177 = vector.shape_cast %176 : vector<16x128xf32> to vector<1x16x128xf32>
        %cst_60 = arith.constant dense<0.000000e+00> : vector<1xf32>
        %178 = vector.multi_reduction <add>, %177, %cst_60 [1, 2] : vector<1x16x128xf32> to vector<1xf32>
        %179 = vector.shape_cast %178 : vector<1xf32> to vector<1x1x1xf32>
        %180 = vector.extract %179[0, 0, 0] : f32 from vector<1x1x1xf32>
        %cst_61 = arith.constant 1.000000e-10 : f32
        %181 = arith.mulf %cst_61, %180 : f32
        %182 = arith.cmpf olt, %173, %181 : f32
        %183 = arith.extui %182 : i1 to i32
        scf.yield %183 : i32
      } else {
        %c0_i32_58 = arith.constant 0 : i32
        scf.yield %c0_i32_58 : i32
      }
      %c1_i32_57 = arith.constant 1 : i32
      %167 = arith.addi %arg3, %c1_i32_57 : i32
      scf.yield %167, %166, %93, %97, %101, %147, %151, %155, %159 : i32, i32, vector<16x128xf32>, vector<16x128xf32>, vector<16x128xf32>, vector<16x128xf32>, vector<16x128xf32>, vector<16x128xf32>, vector<16x128xf32>
    }
    %c0_8 = arith.constant 0 : index
    %c0_9 = arith.constant 0 : index
    %17 = vector.load %arg2[%c0_8, %c0_9] : memref<16x128xf32, #tpu.memory_space<vmem>>, vector<16x128xf32>
    tpu.vector_store %arg2[%c0_8, %c0_9], %16#2 {strides = array<i32>} : memref<16x128xf32, #tpu.memory_space<vmem>>, vector<16x128xf32>,
    return
  }
  func.func @transform_0(%arg0: i32) -> (i32, i32) {
    %c0_i32 = arith.constant 0 : i32
    %c0_i32_0 = arith.constant 0 : i32
    return %c0_i32, %arg0 : i32, i32
  }
  func.func @transform_1(%arg0: i32) -> (i32, i32) {
    %c0_i32 = arith.constant 0 : i32
    %c0_i32_0 = arith.constant 0 : i32
    return %c0_i32, %arg0 : i32, i32
  }
}

</mosaic_0001>

<llo_original>
// kernel: tpu_custom_call.1
$region0: #{tpu_custom_call.1}
  #allocation0 [shape = 'u32[]', space=smem, size = 0x4, offset = 0x4, fixed_abs, tag = 'smem constant byte address 0x4 - core index']
  #allocation1 [shape = 'u32[144,128]{1,0:T(1,128)}', space=vmem, size = 0x12000, scoped, tag = 'internal scratch']
  %s0 = inlined_call_operand.hbm [shape: f32[16,128], index: 0, kind: input, shape index: {}]
  %s1 = inlined_call_operand.hbm [shape: f32[16,128], index: 1, kind: output, shape index: {}]
  %s2 = sld [smem:[#allocation0]]
  $region33: #{tpu_custom_call.1} parent=0
    _
  %s4 = ssub.s32 1, %s2
  %s5 = scalar_select 0, %s4, %s2
  $region1: #{tpu_custom_call.1} parent=0
    #allocation2 [shape = 'u8[8192]{0}', space=vmem, size = 0x2000, scoped, tag = 'input window, operand 0, single buffered']
    #allocation3 [shape = 's32[1]{0}', space=sflag, size = 0x4, scoped, tag = 'scoped memory for tpu_custom_call.1']
    #allocation4 [shape = 's32[1]{0}', space=sflag, size = 0x4, scoped, tag = 'scoped memory for tpu_custom_call.1']
    #allocation5 [shape = 'u8[8192]{0}', space=vmem, size = 0x2000, scoped, tag = 'output window, operand 0, single buffered']
    %6 = vsyncpa [#allocation3], 0
    %7 = vsyncpa [#allocation4], 0
    // Predicated region
    $region2: #{tpu_custom_call.1} parent=1 // pred_check
      _
    $region3: #{tpu_custom_call.1} parent=1 // pred_check_branch
      %9 = sbr.rel (0) target = $region5
    $region4: #{tpu_custom_call.1} parent=1 // pred_region
      %s11 = ssub.s32 256, 256
      %12 = vsyncadd [#allocation3], %s11
      %s13 = sshll.u32 [#allocation2], 4
      %s14 = int_to_ptr.vmem [resolvable:$true] %s13
      %19 = dma.hbm_to_vmem [thread:$0]  %s0, 256, %s14, [#allocation3], 128, 128, 8
    $region5: #{tpu_custom_call.1} parent=1 // pred_fallthru
      _
    // Predicated region
    $region6: #{tpu_custom_call.1} parent=1 // pred_check
      _
    $region7: #{tpu_custom_call.1} parent=1 // pred_check_branch
      %21 = sbr.rel (0) target = $region9
    $region8: #{tpu_custom_call.1} parent=1 // pred_region
      %22 = dma.done [#allocation3], 256
    $region9: #{tpu_custom_call.1} parent=1 // pred_fallthru
      _
    %v23 = vld [vmem:[#allocation2] sm:$0xff]
    %v24 = vld [vmem:[#allocation2 + $0x8] sm:$0xff]
    %v25 = vmul.f32 %v23, 0.01
    %v26 = vmul.f32 %v24, 0.01
    %v27 = vlaneseq
    %v28 = vshrl.u32 %v27, 7
    %v29 = vadd.s32 %v28, 8
    %v30 = vlaneseq
    %v31 = vand.u32 %v30, 127
    %v32 = vand.u32 %v31, 15
    %vm33 = vcmp.eq.s32.totalorder %v28, 0
    %vm34 = vcmp.eq.s32.totalorder %v29, 0
    %vm35 = vcmp.eq.s32.totalorder %v28, 15
    %vm36 = vcmp.eq.s32.totalorder %v29, 15
    %vm37 = vcmp.eq.s32.totalorder %v32, 0
    %vm38 = vcmp.eq.s32.totalorder %v32, 15
    // While loop
    $region10: #{tpu_custom_call.1} parent=1 // loop_pre_header
      _
    $region11: #{tpu_custom_call.1} parent=1 // loop_header
      %s40 = sphi 0, %s341
      %s41 = sphi 0, %s340
      %v42 = vphi %v23, %v190
      %v43 = vphi %v24, %v191
      %v44 = vphi 0.0, %v196
      %v45 = vphi 0.0, %v197
      %v46 = vphi 0.0, %v202
      %v47 = vphi 0.0, %v203
      %v48 = vphi 0.0, %v278
      %v49 = vphi 0.0, %v279
      %v50 = vphi 0.0, %v284
      %v51 = vphi 0.0, %v285
      %v52 = vphi 0.0, %v290
      %v53 = vphi 0.0, %v291
      %v54 = vphi 0.0, %v296
      %v55 = vphi 0.0, %v297
      %p56 = scmp.lt.s32.totalorder %s40, 1
      %p57 = scmp.eq.s32.totalorder %s41, 0
      %p58 = pnand %p56, %p57
      %p59 = pneg %p58
    $region12: #{tpu_custom_call.1} parent=1 // loop_header_branch
      %61 = sbr.rel (%p58) target = $region16
    $region13: #{tpu_custom_call.1} parent=1 // loop_body
      %v62 = vrot.slane %v48, 1
      %v63 = vrot.slane %v49, 1
      %vm64 = vcmp.lt.s32.totalorder %v28, 7
      %v65 = vsel %vm64, %v62, %v63
      %v66 = vsel %vm64, %v63, %v62
      %v67 = vsel %vm35, 0.0, %v65
      %v68 = vsel %vm36, 0.0, %v66
      %v69 = vsub.f32 %v48, %v67
      %v70 = vsub.f32 %v49, %v68
      %71 = vrot.lane.b32.xlu0 %v50, 127
      %v72 = vpop.permute.xlu0 %71
      %73 = vrot.lane.b32.xlu0 %v51, 127
      %v74 = vpop.permute.xlu0 %73
      %v75 = vsel %vm38, 0.0, %v72
      %v76 = vsel %vm38, 0.0, %v74
      %v77 = vsub.f32 %v69, %v75
      %v78 = vsub.f32 %v70, %v76
      %v79 = vsel %vm37, 0.0, %v50
      %v80 = vsel %vm37, 0.0, %v51
      %v81 = vadd.f32 %v77, %v79
      %v82 = vadd.f32 %v78, %v80
      %83 = vrot.lane.b32.xlu0 %v52, 127
      %v84 = vpop.permute.xlu0 %83
      %85 = vrot.lane.b32.xlu0 %v53, 127
      %v86 = vpop.permute.xlu0 %85
      %v87 = vsel %vm38, 0.0, %v84
      %v88 = vsel %vm38, 0.0, %v86
      %v89 = vsub.f32 %v52, %v87
      %v90 = vsub.f32 %v53, %v88
      %v91 = vsel %vm35, 0.0, %v54
      %v92 = vsel %vm36, 0.0, %v55
      %v93 = vsub.f32 %v89, %v91
      %v94 = vsub.f32 %v90, %v92
      %v95 = vrot.slane %v54, 7
      %v96 = vrot.slane %v55, 7
      %vm97 = vcmp.lt.s32.totalorder %v28, 1
      %v98 = vsel %vm97, %v95, %v96
      %v99 = vsel %vm97, %v96, %v95
      %v100 = vsel %vm33, 0.0, %v99
      %v101 = vsel %vm34, 0.0, %v98
      %v102 = vadd.f32 %v93, %v100
      %v103 = vadd.f32 %v94, %v101
      %v104 = vmul.f32 %v81, 0.01
      %v105 = vmul.f32 %v82, 0.01
      %v106 = vmul.f32 %v102, 0.01
      %v107 = vmul.f32 %v103, 0.01
      %v108 = vsel %vm35, 0.0, %v104
      %v109 = vsel %vm36, 0.0, %v105
      %v110 = vsel %vm38, 0.0, %v106
      %v111 = vsel %vm38, 0.0, %v107
      %v112 = vrot.slane %v108, 7
      %v113 = vrot.slane %v109, 7
      %v114 = vsel %vm97, %v112, %v113
      %v115 = vsel %vm97, %v113, %v112
      %v116 = vsub.f32 %v115, %v108
      %v117 = vsub.f32 %v114, %v109
      %118 = vrot.lane.b32.xlu0 %v110, 1
      %v119 = vpop.permute.xlu0 %118
      %120 = vrot.lane.b32.xlu0 %v111, 1
      %v121 = vpop.permute.xlu0 %120
      %v122 = vadd.f32 %v116, %v119
      %v123 = vadd.f32 %v117, %v121
      %v124 = vsub.f32 %v122, %v110
      %v125 = vsub.f32 %v123, %v111
      %v126 = vsub.f32 %v42, %v124
      %v127 = vsub.f32 %v43, %v125
      %v128 = vadd.f32 %v126, %v25
      %v129 = vadd.f32 %v127, %v26
      %v130 = vmul.f32 %v128, 0.990099
      %v131 = vmul.f32 %v129, 0.990099
      %v132 = vadd.f32 %v44, %v104
      %v133 = vadd.f32 %v45, %v105
      %v134 = vadd.f32 %v46, %v106
      %v135 = vadd.f32 %v47, %v107
      %v136 = vmul.f32 %v132, %v132
      %v137 = vmul.f32 %v133, %v133
      %v138 = vmul.f32 %v134, %v134
      %v139 = vmul.f32 %v135, %v135
      %v140 = vadd.f32 %v136, %v138
      %v141 = vadd.f32 %v137, %v139
      %v142 = vrsqrt.pop %v140
      %v143 = vrsqrt.pop %v141
      %v144 = vmul.f32 %v142, 0.0
      %v145 = vmul.f32 %v143, 0.0
      %v146 = vmin.f32 %v144, 1.0
      %v147 = vmin.f32 %v145, 1.0
      %v148 = vsub.f32 1.0, %v146
      %v149 = vsub.f32 1.0, %v147
      %v150 = vmul.f32 %v132, %v148
      %v151 = vmul.f32 %v133, %v149
      %v152 = vmul.f32 %v134, %v148
      %v153 = vmul.f32 %v135, %v149
      %v154 = vmul.f32 %v130, 2.0
      %v155 = vmul.f32 %v131, 2.0
      %v156 = vsub.f32 %v154, %v42
      %v157 = vsub.f32 %v155, %v43
      %v158 = vrot.slane %v156, 1
      %v159 = vrot.slane %v157, 1
      %v160 = vsel %vm64, %v158, %v159
      %v161 = vsel %vm64, %v159, %v158
      %v162 = vsub.f32 %v160, %v156
      %v163 = vsub.f32 %v161, %v157
      %v164 = vsel %vm35, 0.0, %v162
      %v165 = vsel %vm36, 0.0, %v163
      %166 = vrot.lane.b32.xlu0 %v156, 127
      %v167 = vpop.permute.xlu0 %166
      %168 = vrot.lane.b32.xlu0 %v157, 127
      %v169 = vpop.permute.xlu0 %168
      %v170 = vsub.f32 %v167, %v156
      %v171 = vsub.f32 %v169, %v157
      %v172 = vsel %vm38, 0.0, %v170
      %v173 = vsel %vm38, 0.0, %v171
      %v174 = vmul.f32 %v150, 2.0
      %v175 = vmul.f32 %v151, 2.0
      %v176 = vsub.f32 %v174, %v44
      %v177 = vsub.f32 %v175, %v45
      %v178 = vsub.f32 %v164, %v176
      %v179 = vsub.f32 %v165, %v177
      %v180 = vmul.f32 %v152, 2.0
      %v181 = vmul.f32 %v153, 2.0
      %v182 = vsub.f32 %v180, %v46
      %v183 = vsub.f32 %v181, %v47
      %v184 = vsub.f32 %v172, %v182
      %v185 = vsub.f32 %v173, %v183
      %v186 = vsub.f32 %v130, %v42
      %v187 = vsub.f32 %v131, %v43
      %v188 = vmul.f32 %v186, 1.99
      %v189 = vmul.f32 %v187, 1.99
      %v190 = vadd.f32 %v42, %v188
      %v191 = vadd.f32 %v43, %v189
      %v192 = vsub.f32 %v150, %v44
      %v193 = vsub.f32 %v151, %v45
      %v194 = vmul.f32 %v192, 1.99
      %v195 = vmul.f32 %v193, 1.99
      %v196 = vadd.f32 %v44, %v194
      %v197 = vadd.f32 %v45, %v195
      %v198 = vsub.f32 %v152, %v46
      %v199 = vsub.f32 %v153, %v47
      %v200 = vmul.f32 %v198, 1.99
      %v201 = vmul.f32 %v199, 1.99
      %v202 = vadd.f32 %v46, %v200
      %v203 = vadd.f32 %v47, %v201
      %v204 = vrot.slane %v178, 7
      %v205 = vrot.slane %v179, 7
      %v206 = vsel %vm97, %v204, %v205
      %v207 = vsel %vm97, %v205, %v204
      %v208 = vsel %vm33, 0.0, %v207
      %v209 = vsel %vm34, 0.0, %v206
      %v210 = vsub.f32 %v178, %v208
      %v211 = vsub.f32 %v179, %v209
      %212 = vrot.lane.b32.xlu0 %v178, 1
      %v213 = vpop.permute.xlu0 %212
      %214 = vrot.lane.b32.xlu0 %v179, 1
      %v215 = vpop.permute.xlu0 %214
      %v216 = vsub.f32 %v178, %v213
      %v217 = vsub.f32 %v179, %v215
      %v218 = vsel %vm37, 0.0, %v216
      %v219 = vsel %vm37, 0.0, %v217
      %220 = vrot.lane.b32.xlu0 %v184, 1
      %v221 = vpop.permute.xlu0 %220
      %222 = vrot.lane.b32.xlu0 %v185, 1
      %v223 = vpop.permute.xlu0 %222
      %v224 = vsel %vm37, 0.0, %v221
      %v225 = vsel %vm37, 0.0, %v223
      %v226 = vsub.f32 %v184, %v224
      %v227 = vsub.f32 %v185, %v225
      %v228 = vrot.slane %v184, 1
      %v229 = vrot.slane %v185, 1
      %v230 = vsel %vm64, %v228, %v229
      %v231 = vsel %vm64, %v229, %v228
      %v232 = vsub.f32 %v230, %v184
      %v233 = vsub.f32 %v231, %v185
      %v234 = vsel %vm35, 0.0, %v232
      %v235 = vsel %vm36, 0.0, %v233
      %v236 = vmul.f32 %v210, 1.3888888
      %v237 = vmul.f32 %v211, 1.3888888
      %v238 = vadd.f32 %v48, %v236
      %v239 = vadd.f32 %v49, %v237
      %v240 = vmul.f32 %v218, 1.3888888
      %v241 = vmul.f32 %v219, 1.3888888
      %v242 = vadd.f32 %v50, %v240
      %v243 = vadd.f32 %v51, %v241
      %v244 = vmul.f32 %v226, 1.3888888
      %v245 = vmul.f32 %v227, 1.3888888
      %v246 = vadd.f32 %v52, %v244
      %v247 = vadd.f32 %v53, %v245
      %v248 = vmul.f32 %v234, 1.3888888
      %v249 = vmul.f32 %v235, 1.3888888
      %v250 = vadd.f32 %v54, %v248
      %v251 = vadd.f32 %v55, %v249
      %v252 = vmul.f32 %v238, %v238
      %v253 = vmul.f32 %v239, %v239
      %v254 = vmul.f32 %v242, %v242
      %v255 = vmul.f32 %v243, %v243
      %v256 = vadd.f32 %v252, %v254
      %v257 = vadd.f32 %v253, %v255
      %v258 = vmul.f32 %v246, %v246
      %v259 = vmul.f32 %v247, %v247
      %v260 = vadd.f32 %v256, %v258
      %v261 = vadd.f32 %v257, %v259
      %v262 = vmul.f32 %v250, %v250
      %v263 = vmul.f32 %v251, %v251
      %v264 = vadd.f32 %v260, %v262
      %v265 = vadd.f32 %v261, %v263
      %v266 = vrsqrt.pop %v264
      %v267 = vrsqrt.pop %v265
      %v268 = vmul.f32 %v266, 0.1
      %v269 = vmul.f32 %v267, 0.1
      %v270 = vmin.f32 %v268, 1.0
      %v271 = vmin.f32 %v269, 1.0
      %v272 = vmul.f32 %v270, 1.99
      %v273 = vmul.f32 %v271, 1.99
      %v274 = vmul.f32 %v48, -0.99
      %v275 = vmul.f32 %v49, -0.99
      %v276 = vmul.f32 %v238, %v272
      %v277 = vmul.f32 %v239, %v273
      %v278 = vadd.f32 %v274, %v276
      %v279 = vadd.f32 %v275, %v277
      %v280 = vmul.f32 %v50, -0.99
      %v281 = vmul.f32 %v51, -0.99
      %v282 = vmul.f32 %v242, %v272
      %v283 = vmul.f32 %v243, %v273
      %v284 = vadd.f32 %v280, %v282
      %v285 = vadd.f32 %v281, %v283
      %v286 = vmul.f32 %v52, -0.99
      %v287 = vmul.f32 %v53, -0.99
      %v288 = vmul.f32 %v246, %v272
      %v289 = vmul.f32 %v247, %v273
      %v290 = vadd.f32 %v286, %v288
      %v291 = vadd.f32 %v287, %v289
      %v292 = vmul.f32 %v54, -0.99
      %v293 = vmul.f32 %v55, -0.99
      %v294 = vmul.f32 %v250, %v272
      %v295 = vmul.f32 %v251, %v273
      %v296 = vadd.f32 %v292, %v294
      %v297 = vadd.f32 %v293, %v295
      %s298 = sand.u32 %s40, 7
      %p299 = scmp.eq.s32.totalorder %s298, 0
      %p300 = scmp.gt.s32.totalorder %s40, 1
      %p301 = pnand %p300, %p299
      %p302 = pneg %p301
      // Predicated region
      $region17: #{tpu_custom_call.1} parent=13 // pred_check
        _
      $region18: #{tpu_custom_call.1} parent=13 // pred_check_branch
        %304 = sbr.rel (%p301) target = $region20
      $region19: #{tpu_custom_call.1} parent=13 // pred_region
        %v305 = vsub.f32 %v42, %v190
        %v306 = vsub.f32 %v43, %v191
        %v307 = vmul.f32 %v305, %v305
        %v308 = vmul.f32 %v306, %v306
        %v309 = vadd.f32 %v307, %v308
        %310 = vadd.xlane.f32.xlu0 %v309
        %v311 = vpop.xlane.xlu0 %310
        %v312 = vrot.slane %v311, 4
        %v313 = vadd.f32 %v311, %v312
        %v314 = vrot.slane %v313, 2
        %v315 = vadd.f32 %v313, %v314
        %v316 = vrot.slane %v315, 1
        %v317 = vadd.f32 %v315, %v316
        %s318 = vtos %v317
        %v319 = vadd.f32 %v190, 1e-12
        %v320 = vadd.f32 %v191, 1e-12
        %v321 = vmul.f32 %v319, %v319
        %v322 = vmul.f32 %v320, %v320
        %v323 = vadd.f32 %v321, %v322
        %324 = vadd.xlane.f32.xlu0 %v323
        %v325 = vpop.xlane.xlu0 %324
        %v326 = vrot.slane %v325, 4
        %v327 = vadd.f32 %v325, %v326
        %v328 = vrot.slane %v327, 2
        %v329 = vadd.f32 %v327, %v328
        %v330 = vrot.slane %v329, 1
        %v331 = vadd.f32 %v329, %v330
        %s332 = vtos %v331
        %s333 = smul.f32 %s332, 1e-10
        %p334 = scmp.lt.f32.partialorder %s318, %s333
        %s335 = scalar_select %p334, 1, 0
      $region20: #{tpu_custom_call.1} parent=13 // pred_fallthru
        %s336 = sphi 0, %s335
      // Predicated region
      $region21: #{tpu_custom_call.1} parent=13 // pred_check
        %p337 = pneg %p301
      $region22: #{tpu_custom_call.1} parent=13 // pred_check_branch
        %339 = sbr.rel (%p337) target = $region24
      $region23: #{tpu_custom_call.1} parent=13 // pred_region
        _
      $region24: #{tpu_custom_call.1} parent=13 // pred_fallthru
        %s340 = sphi %s336, 0
      %s341 = sadd.s32 %s40, 1
    $region14: #{tpu_custom_call.1} parent=1 // loop_footer
      _
    $region15: #{tpu_custom_call.1} parent=1 // loop_footer_branch
      %39 = sbr.rel target = $region11
    $region16: #{tpu_custom_call.1} parent=1 // loop_exit
      _
    %342 = vst [vmem:[#allocation5] sm:$0xff] %v42
    %343 = vst [vmem:[#allocation5 + $0x8] sm:$0xff] %v43
    // Predicated region
    $region25: #{tpu_custom_call.1} parent=1 // pred_check
      _
    $region26: #{tpu_custom_call.1} parent=1 // pred_check_branch
      %345 = sbr.rel (0) target = $region28
    $region27: #{tpu_custom_call.1} parent=1 // pred_region
      %s347 = ssub.s32 256, 256
      %348 = vsyncadd [#allocation4], %s347
      %s349 = sshll.u32 [#allocation5], 4
      %s350 = int_to_ptr.vmem [resolvable:$true] %s349
      %355 = dma.vmem_to_hbm [thread:$0]  %s350, 256, %s1, [#allocation4], 128, 128, 8
    $region28: #{tpu_custom_call.1} parent=1 // pred_fallthru
      _
    // Predicated region
    $region29: #{tpu_custom_call.1} parent=1 // pred_check
      _
    $region30: #{tpu_custom_call.1} parent=1 // pred_check_branch
      %357 = sbr.rel (0) target = $region32
    $region31: #{tpu_custom_call.1} parent=1 // pred_region
      %358 = dma.done [#allocation4], 256
    $region32: #{tpu_custom_call.1} parent=1 // pred_fallthru
      _
    %359 = vsyncpa [#allocation3], 1
    %360 = vsyncpa [#allocation4], 1

</llo_original>
